<compile_context>
chip_gen: v6e
topology: v6e:2x2x1
jax: 0.10.0
libtpu: 0.0.40
codegen_flags: <defaults>
</compile_context>

<pallas_src>
import jax
import jax.numpy as jnp
from jax import lax
from jax.experimental import pallas as pl
from jax.experimental.pallas import tpu as pltpu


# ------------------------------ Pallas kernel -------------------------------

def _fused_cross_attention_kernel(q_ref, v_ref, wqv_ref, wk_ref, w1_ref, w2_ref,
                                  bqv_ref, bk_ref, bn_ref, b1_ref, b2_ref,
                                  o_ref, x_scr):
    """One batch: projections + attention + BN/LeakyReLU + reinterpret + conv_out."""
    cq = q_ref.shape[1]
    ck = v_ref.shape[1]
    n = q_ref.shape[2]
    m_blk = n // cq                                    # pixels per reinterpreted channel

    qf = q_ref[0]                                      # (Cq, N)  input dtype, no up-cast
    vf = v_ref[0]                                      # (Ck, N)

    # 1x1-conv projections.  wv & wq are stacked (they share the RHS qf) so a single MXU
    # pass produces both value and query; biases are lane-dense rows -> plain VPU adds.
    pv = jnp.dot(wqv_ref[...], qf, preferred_element_type=jnp.float32) + bqv_ref[...]
    value = pv[:ck]                                    # (Ck, N) f32
    query = pv[ck:]                                    # (Cq, N) f32

    key = jnp.dot(wk_ref[...], vf, preferred_element_type=jnp.float32) + bk_ref[...]

    # scaled_dot_product_attention: softmax(q @ k^T / sqrt(N)) @ v   (exact softmax).
    scores = lax.dot_general(query, key,
                             dimension_numbers=(((1,), (1,)), ((), ())),
                             preferred_element_type=jnp.float32)      # (Cq, Ck)
    scores = scores * (1.0 / (float(n) ** 0.5))        # query.size(-1) == N
    scores = scores - jnp.max(scores, axis=-1, keepdims=True)
    p = jnp.exp(scores)
    p = p / jnp.sum(p, axis=-1, keepdims=True)
    out = jnp.dot(p, value, preferred_element_type=jnp.float32)       # (Cq, N)

    # BatchNorm (inference, eps=1e-4) + LeakyReLU(0.01), applied pre-permute using the
    # folded lane-dense (1, N) scale/shift (elementwise ops commute with the permute).
    y = out * bn_ref[0:1, :] + bn_ref[1:2, :]
    y = jnp.maximum(y, 0.01 * y).astype(x_scr.dtype)

    # permute(0,2,1).contiguous().view(B,-1,H,W): Cq x Cq block transpose, slicing the live
    # value y straight into x_scr (no scratch round-trip):
    #   x_scr[cp, c*M + m] = y[c, cp*M + m]
    # i.e. the reinterpreted tensor with its columns in block-permuted order; the 1x1 convs
    # below are per-pixel, so this commutes, and the wrapper restores m*Cq + c order.
    for c in range(cq):
        for cp in range(cq):
            x_scr[cp:cp + 1, c * m_blk:(c + 1) * m_blk] = (
                y[c:c + 1, cp * m_blk:(cp + 1) * m_blk])
    xcat = x_scr[...]                                  # (Cq, N)

    # conv_out tail: 1x1 conv -> LeakyReLU -> 1x1 conv (lane-dense bias rows).
    h = jnp.dot(w1_ref[...], xcat, preferred_element_type=jnp.float32) + b1_ref[...]
    h = jnp.maximum(h, 0.01 * h).astype(xcat.dtype)
    z = jnp.dot(w2_ref[...], h, preferred_element_type=jnp.float32) + b2_ref[...]
    o_ref[0] = z.astype(o_ref.dtype)


# ------------------------- parameter folding (one-time) ---------------------

def pack_params(params, n_pixels, eps=1e-4, dtype=jnp.float32):
    """One-time folding, outside the hot path:
       * wv & wq stacked (shared matmul RHS),
       * conv biases pre-broadcast to lane-dense (rows, N) vectors,
       * BatchNorm (inference) folded into a lane-dense (2, N) scale/shift,
       * MXU weights cast to `dtype` (pass jnp.bfloat16 for bf16 activations so the MXU
         sees bf16 operands; accumulation stays f32 inside the kernel)."""
    cq = params["wq"].shape[0]
    assert n_pixels % cq == 0, "in-kernel reinterpret needs H*W % qv_in_channels == 0"
    m_blk = n_pixels // cq
    ones = jnp.ones((1, n_pixels), jnp.float32)

    wqv = jnp.concatenate([params["wv"], params["wq"]], axis=0).astype(dtype)   # (Ck+Cq,Cq)
    bqv = (jnp.concatenate([params["bv"], params["bq"]], axis=0)
           .astype(jnp.float32) * ones)                                         # (Ck+Cq, N)

    scale = params["bn_gamma"] / jnp.sqrt(params["bn_var"] + eps)               # (Cq,)
    shift = params["bn_beta"] - params["bn_mean"] * scale
    bn = jnp.stack([jnp.repeat(scale, m_blk), jnp.repeat(shift, m_blk)],
                   axis=0).astype(jnp.float32)                                  # (2, N)

    return {
        "wqv": wqv,
        "wk": params["wk"].astype(dtype),
        "w1": params["w1"].astype(dtype),
        "w2": params["w2"].astype(dtype),
        "bqv": bqv,
        "bk": params["bk"].astype(jnp.float32) * ones,
        "b1": params["b1"].astype(jnp.float32) * ones,
        "b2": params["b2"].astype(jnp.float32) * ones,
        "bn": bn,
    }


# ------------------------------ JAX wrapper ----------------------------------

@jax.jit
def cross_attention_forward(q, v, packed):
    B, Cq, Hq, Wq = q.shape
    _, Ck, Hv, Wv = v.shape
    N = Hq * Wq
    assert Hv * Wv == N, "bmm in scaled_dot_product_attention needs equal spatial sizes"
    assert N % Cq == 0
    m_blk = N // Cq

    q_flat = q.reshape(B, Cq, N)        # dtype passed through (bf16 inputs stay bf16)
    v_flat = v.reshape(B, Ck, N)

    flops = 2 * B * N * ((Ck + Cq) * Cq + Ck * Ck + 2 * Cq * Ck + 2 * Cq * Cq) \
        + 10 * B * Cq * N
    bytes_accessed = (q_flat.size * q_flat.dtype.itemsize
                      + v_flat.size * v_flat.dtype.itemsize
                      + B * Cq * N * q_flat.dtype.itemsize
                      + sum(packed[k].size * packed[k].dtype.itemsize for k in packed))
    cost = pl.CostEstimate(flops=int(flops), transcendentals=int(B * Cq * Ck),
                           bytes_accessed=int(bytes_accessed))

    zcat = pl.pallas_call(
        _fused_cross_attention_kernel,
        out_shape=jax.ShapeDtypeStruct((B, Cq, N), q.dtype),
        grid=(B,),
        in_specs=[
            pl.BlockSpec((1, Cq, N), lambda b: (b, 0, 0)),      # q
            pl.BlockSpec((1, Ck, N), lambda b: (b, 0, 0)),      # v
            pl.BlockSpec((Ck + Cq, Cq), lambda b: (0, 0)),      # wqv (stacked wv;wq)
            pl.BlockSpec((Ck, Ck), lambda b: (0, 0)),           # wk
            pl.BlockSpec((Cq, Cq), lambda b: (0, 0)),           # w1
            pl.BlockSpec((Cq, Cq), lambda b: (0, 0)),           # w2
            pl.BlockSpec((Ck + Cq, N), lambda b: (0, 0)),       # bqv (lane-dense)
            pl.BlockSpec((Ck, N), lambda b: (0, 0)),            # bk
            pl.BlockSpec((2, N), lambda b: (0, 0)),             # bn scale/shift
            pl.BlockSpec((Cq, N), lambda b: (0, 0)),            # b1
            pl.BlockSpec((Cq, N), lambda b: (0, 0)),            # b2
        ],
        out_specs=pl.BlockSpec((1, Cq, N), lambda b: (b, 0, 0)),
        scratch_shapes=[pltpu.VMEM((Cq, N), packed["w1"].dtype)],
        compiler_params=pltpu.CompilerParams(
            dimension_semantics=("parallel",)),
        cost_estimate=cost,
    )(q_flat, v_flat, packed["wqv"], packed["wk"], packed["w1"], packed["w2"],
      packed["bqv"], packed["bk"], packed["bn"], packed["b1"], packed["b2"])

    # Undo the block-permuted column order left by the in-kernel block transpose:
    #   zcat[b, ch, c*M + m] == result[b, ch, m*Cq + c]
    # TODO(synk): for large H*W fold this interleave into the kernel's output stores
    #             instead of this (tiny, output-only) wrapper-side transpose.
    out = zcat.reshape(B, Cq, Cq, m_blk).transpose(0, 1, 3, 2)
    return out.reshape(B, Cq, Hq, Wq)


# --------------------------- pure-JAX reference ------------------------------

def cross_attention_reference(q, v, params):
    hp = jax.lax.Precision.HIGHEST
    B, Cq, Hq, Wq = q.shape
    _, Ck, Hv, Wv = v.shape
    Nq, Nv = Hq * Wq, Hv * Wv
    qf = q.reshape(B, Cq, Nq)
    vf = v.reshape(B, Ck, Nv)

    query = jnp.einsum('oi,bin->bon', params["wq"], qf, precision=hp) + params["bq"][None]
    key   = jnp.einsum('oi,bin->bon', params["wk"], vf, precision=hp) + params["bk"][None]
    value = jnp.einsum('oi,bin->bon', params["wv"], qf, precision=hp) + params["bv"][None]

    scores = jnp.einsum('bqn,bkn->bqk', query, key, precision=hp) / (float(Nq) ** 0.5)
    p = jax.nn.softmax(scores, axis=-1)
    out = jnp.einsum('bqk,bkn->bqn', p, value, precision=hp)

    x2 = jnp.transpose(out, (0, 2, 1)).reshape(B, Cq, Nq)

    eps = 1e-4
    scale = (params["bn_gamma"] / jnp.sqrt(params["bn_var"] + eps)).reshape(1, Cq, 1)
    shift = params["bn_beta"].reshape(1, Cq, 1) - params["bn_mean"].reshape(1, Cq, 1) * scale
    y = x2 * scale + shift
    y = jnp.where(y >= 0, y, 0.01 * y)
    y = jnp.einsum('oi,bin->bon', params["w1"], y, precision=hp) + params["b1"][None]
    y = jnp.where(y >= 0, y, 0.01 * y)
    y = jnp.einsum('oi,bin->bon', params["w2"], y, precision=hp) + params["b2"][None]
    return y.reshape(B, Cq, Hq, Wq)


# --------------------------------- main ---------------------------------------

if __name__ == "__main__":
    B, Cq, Ck = 2, 4, 8          # qv_in_channels=4, k_in_channels=8
    H = W = 16                   # q and v spatial sizes must match

    root = jax.random.PRNGKey(0)
    keys = jax.random.split(root, 16)

    q = jax.random.normal(keys[0], (B, Cq, H, W), jnp.float32)
    v = jax.random.normal(keys[1], (B, Ck, H, W), jnp.float32)

    # Non-trivial biases / BN running stats so the folded-bias and folded-BN paths are
    # actually exercised (the PyTorch init zeroes biases, but forward must handle any).
    params = {
        "wq": 0.2 * jax.random.normal(keys[2], (Cq, Cq), jnp.float32),
        "bq": 0.1 * jax.random.normal(keys[3], (Cq, 1), jnp.float32),
        "wk": 0.2 * jax.random.normal(keys[4], (Ck, Ck), jnp.float32),
        "bk": 0.1 * jax.random.normal(keys[5], (Ck, 1), jnp.float32),
        "wv": 0.2 * jax.random.normal(keys[6], (Ck, Cq), jnp.float32),
        "bv": 0.1 * jax.random.normal(keys[7], (Ck, 1), jnp.float32),
        "bn_gamma": 1.0 + 0.1 * jax.random.normal(keys[8], (Cq,), jnp.float32),
        "bn_beta": 0.1 * jax.random.normal(keys[9], (Cq,), jnp.float32),
        "bn_mean": 0.1 * jax.random.normal(keys[10], (Cq,), jnp.float32),
        "bn_var": jax.random.uniform(keys[11], (Cq,), jnp.float32, 0.5, 1.5),
        "w1": 0.2 * jax.random.normal(keys[12], (Cq, Cq), jnp.float32),
        "b1": 0.1 * jax.random.normal(keys[13], (Cq, 1), jnp.float32),
        "w2": 0.2 * jax.random.normal(keys[14], (Cq, Cq), jnp.float32),
        "b2": 0.1 * jax.random.normal(keys[15], (Cq, 1), jnp.float32),
    }

    packed = pack_params(params, H * W)          # one-time folding, outside the hot path

    out = cross_attention_forward(q, v, packed)
    out = jax.block_until_ready(out)

    ref = cross_attention_reference(q, v, params)
    assert out.shape == (B, Cq, H, W)
    # Approx reciprocal removed -> tolerance tightened 4x vs. the previous revision; the
    # remaining slack only covers MXU-vs-XLA matmul precision differences.
    assert jnp.allclose(out, ref, atol=5e-4, rtol=5e-4), "mismatch vs reference"

    print("KERNEL_OK")
</pallas_src>

<mosaic_0001>
module attributes {stable_mosaic.version = 11 : i64} {
  func.func @_fused_cross_attention_kernel(%arg0: i32, %arg1: memref<1x4x256xf32, #tpu.memory_space<vmem>>, %arg2: memref<1x8x256xf32, #tpu.memory_space<vmem>>, %arg3: memref<12x4xf32, #tpu.memory_space<vmem>>, %arg4: memref<8x8xf32, #tpu.memory_space<vmem>>, %arg5: memref<4x4xf32, #tpu.memory_space<vmem>>, %arg6: memref<4x4xf32, #tpu.memory_space<vmem>>, %arg7: memref<12x256xf32, #tpu.memory_space<vmem>>, %arg8: memref<8x256xf32, #tpu.memory_space<vmem>>, %arg9: memref<2x256xf32, #tpu.memory_space<vmem>>, %arg10: memref<4x256xf32, #tpu.memory_space<vmem>>, %arg11: memref<4x256xf32, #tpu.memory_space<vmem>>, %arg12: memref<1x4x256xf32, #tpu.memory_space<vmem>>, %arg13: memref<4x256xf32, #tpu.memory_space<vmem>>) attributes {dimension_semantics = [#tpu.dimension_semantics<parallel>], iteration_bounds = array<i64: 2>, scalar_prefetch = 0 : i64, scratch_operands = 1 : i64, tpu.core_type = #tpu.core_type<tc>, window_params = [{transform_indices = @transform_0, window_bounds = array<i64: 1, 4, 256>}, {transform_indices = @transform_1, window_bounds = array<i64: 1, 8, 256>}, {pipeline_mode = #tpu.pipeline_mode<synchronous>, transform_indices = @transform_2, window_bounds = array<i64: 12, 4>}, {pipeline_mode = #tpu.pipeline_mode<synchronous>, transform_indices = @transform_3, window_bounds = array<i64: 8, 8>}, {pipeline_mode = #tpu.pipeline_mode<synchronous>, transform_indices = @transform_4, window_bounds = array<i64: 4, 4>}, {pipeline_mode = #tpu.pipeline_mode<synchronous>, transform_indices = @transform_5, window_bounds = array<i64: 4, 4>}, {pipeline_mode = #tpu.pipeline_mode<synchronous>, transform_indices = @transform_6, window_bounds = array<i64: 12, 256>}, {pipeline_mode = #tpu.pipeline_mode<synchronous>, transform_indices = @transform_7, window_bounds = array<i64: 8, 256>}, {pipeline_mode = #tpu.pipeline_mode<synchronous>, transform_indices = @transform_8, window_bounds = array<i64: 2, 256>}, {pipeline_mode = #tpu.pipeline_mode<synchronous>, transform_indices = @transform_9, window_bounds = array<i64: 4, 256>}, {pipeline_mode = #tpu.pipeline_mode<synchronous>, transform_indices = @transform_10, window_bounds = array<i64: 4, 256>}, {transform_indices = @transform_11, window_bounds = array<i64: 1, 4, 256>}]} {
    %c0 = arith.constant 0 : index
    %c0_0 = arith.constant 0 : index
    %c0_1 = arith.constant 0 : index
    %0 = vector.load %arg1[%c0, %c0_0, %c0_1] : memref<1x4x256xf32, #tpu.memory_space<vmem>>, vector<1x4x256xf32>
    %1 = vector.shape_cast %0 : vector<1x4x256xf32> to vector<4x256xf32>
    %c0_2 = arith.constant 0 : index
    %c0_3 = arith.constant 0 : index
    %c0_4 = arith.constant 0 : index
    %2 = vector.load %arg2[%c0_2, %c0_3, %c0_4] : memref<1x8x256xf32, #tpu.memory_space<vmem>>, vector<1x8x256xf32>
    %3 = vector.shape_cast %2 : vector<1x8x256xf32> to vector<8x256xf32>
    %c0_5 = arith.constant 0 : index
    %c0_6 = arith.constant 0 : index
    %4 = vector.load %arg3[%c0_5, %c0_6] : memref<12x4xf32, #tpu.memory_space<vmem>>, vector<12x4xf32>
    %cst = arith.constant dense<0.000000e+00> : vector<12x256xf32>
    %5 = tpu.matmul %4, %1, %cst {dimension_numbers = #tpu.dot_dimension_numbers<[1], [0], [0], [1], [0, 0, 1, 1], [], []>} : vector<12x4xf32>, vector<4x256xf32>, vector<12x256xf32> -> vector<12x256xf32>
    %c0_7 = arith.constant 0 : index
    %c0_8 = arith.constant 0 : index
    %6 = vector.load %arg7[%c0_7, %c0_8] : memref<12x256xf32, #tpu.memory_space<vmem>>, vector<12x256xf32>
    %7 = arith.addf %5, %6 : vector<12x256xf32>
    %8 = vector.extract_strided_slice %7 {offsets = [0, 0], sizes = [8, 256], strides = [1, 1]} : vector<12x256xf32> to vector<8x256xf32>
    %9 = vector.extract_strided_slice %7 {offsets = [8, 0], sizes = [4, 256], strides = [1, 1]} : vector<12x256xf32> to vector<4x256xf32>
    %c0_9 = arith.constant 0 : index
    %c0_10 = arith.constant 0 : index
    %10 = vector.load %arg4[%c0_9, %c0_10] : memref<8x8xf32, #tpu.memory_space<vmem>>, vector<8x8xf32>
    %cst_11 = arith.constant dense<0.000000e+00> : vector<8x256xf32>
    %11 = tpu.matmul %10, %3, %cst_11 {dimension_numbers = #tpu.dot_dimension_numbers<[1], [0], [0], [1], [0, 0, 1, 1], [], []>} : vector<8x8xf32>, vector<8x256xf32>, vector<8x256xf32> -> vector<8x256xf32>
    %c0_12 = arith.constant 0 : index
    %c0_13 = arith.constant 0 : index
    %12 = vector.load %arg8[%c0_12, %c0_13] : memref<8x256xf32, #tpu.memory_space<vmem>>, vector<8x256xf32>
    %13 = arith.addf %11, %12 : vector<8x256xf32>
    %cst_14 = arith.constant dense<0.000000e+00> : vector<4x8xf32>
    %14 = tpu.matmul %9, %13, %cst_14 {dimension_numbers = #tpu.dot_dimension_numbers<[1], [1], [0], [0], [0, 0, 1, 0], [], []>} : vector<4x256xf32>, vector<8x256xf32>, vector<4x8xf32> -> vector<4x8xf32>
    %cst_15 = arith.constant 6.250000e-02 : f32
    %15 = vector.broadcast %cst_15 : f32 to vector<4x8xf32>
    %16 = arith.mulf %14, %15 : vector<4x8xf32>
    %cst_16 = arith.constant dense<0xFF800000> : vector<4xf32>
    %17 = vector.multi_reduction <maximumf>, %16, %cst_16 [1] : vector<4x8xf32> to vector<4xf32>
    %18 = vector.shape_cast %17 : vector<4xf32> to vector<4x1xf32>
    %19 = vector.broadcast %18 : vector<4x1xf32> to vector<4x8xf32>
    %20 = arith.subf %16, %19 : vector<4x8xf32>
    %21 = math.exp %20 : vector<4x8xf32>
    %cst_17 = arith.constant dense<0.000000e+00> : vector<4xf32>
    %22 = vector.multi_reduction <add>, %21, %cst_17 [1] : vector<4x8xf32> to vector<4xf32>
    %23 = vector.shape_cast %22 : vector<4xf32> to vector<4x1xf32>
    %24 = vector.broadcast %23 : vector<4x1xf32> to vector<4x8xf32>
    %25 = arith.divf %21, %24 : vector<4x8xf32>
    %cst_18 = arith.constant dense<0.000000e+00> : vector<4x256xf32>
    %26 = tpu.matmul %25, %8, %cst_18 {dimension_numbers = #tpu.dot_dimension_numbers<[1], [0], [0], [1], [0, 0, 1, 1], [], []>} : vector<4x8xf32>, vector<8x256xf32>, vector<4x256xf32> -> vector<4x256xf32>
    %c0_19 = arith.constant 0 : index
    %c0_20 = arith.constant 0 : index
    %27 = vector.load %arg9[%c0_19, %c0_20] : memref<2x256xf32, #tpu.memory_space<vmem>>, vector<1x256xf32>
    %28 = vector.broadcast %27 : vector<1x256xf32> to vector<4x256xf32>
    %29 = arith.mulf %26, %28 : vector<4x256xf32>
    %c1 = arith.constant 1 : index
    %c0_21 = arith.constant 0 : index
    %30 = vector.load %arg9[%c1, %c0_21] : memref<2x256xf32, #tpu.memory_space<vmem>>, vector<1x256xf32>
    %31 = vector.broadcast %30 : vector<1x256xf32> to vector<4x256xf32>
    %32 = arith.addf %29, %31 : vector<4x256xf32>
    %cst_22 = arith.constant 0.00999999977 : f32
    %33 = vector.broadcast %cst_22 : f32 to vector<4x256xf32>
    %34 = arith.mulf %33, %32 : vector<4x256xf32>
    %35 = arith.maximumf %32, %34 : vector<4x256xf32>
    %36 = vector.extract_strided_slice %35 {offsets = [0, 0], sizes = [1, 64], strides = [1, 1]} : vector<4x256xf32> to vector<1x64xf32>
    %c0_23 = arith.constant 0 : index
    %c0_24 = arith.constant 0 : index
    %37 = vector.load %arg13[%c0_23, %c0_24] : memref<4x256xf32, #tpu.memory_space<vmem>>, vector<1x64xf32>
    tpu.vector_store %arg13[%c0_23, %c0_24], %36 {strides = array<i32>} : memref<4x256xf32, #tpu.memory_space<vmem>>, vector<1x64xf32>,
    %38 = vector.extract_strided_slice %35 {offsets = [0, 64], sizes = [1, 64], strides = [1, 1]} : vector<4x256xf32> to vector<1x64xf32>
    %c1_25 = arith.constant 1 : index
    %c0_26 = arith.constant 0 : index
    %39 = vector.load %arg13[%c1_25, %c0_26] : memref<4x256xf32, #tpu.memory_space<vmem>>, vector<1x64xf32>
    tpu.vector_store %arg13[%c1_25, %c0_26], %38 {strides = array<i32>} : memref<4x256xf32, #tpu.memory_space<vmem>>, vector<1x64xf32>,
    %40 = vector.extract_strided_slice %35 {offsets = [0, 128], sizes = [1, 64], strides = [1, 1]} : vector<4x256xf32> to vector<1x64xf32>
    %c2 = arith.constant 2 : index
    %c0_27 = arith.constant 0 : index
    %41 = vector.load %arg13[%c2, %c0_27] : memref<4x256xf32, #tpu.memory_space<vmem>>, vector<1x64xf32>
    tpu.vector_store %arg13[%c2, %c0_27], %40 {strides = array<i32>} : memref<4x256xf32, #tpu.memory_space<vmem>>, vector<1x64xf32>,
    %42 = vector.extract_strided_slice %35 {offsets = [0, 192], sizes = [1, 64], strides = [1, 1]} : vector<4x256xf32> to vector<1x64xf32>
    %c3 = arith.constant 3 : index
    %c0_28 = arith.constant 0 : index
    %43 = vector.load %arg13[%c3, %c0_28] : memref<4x256xf32, #tpu.memory_space<vmem>>, vector<1x64xf32>
    tpu.vector_store %arg13[%c3, %c0_28], %42 {strides = array<i32>} : memref<4x256xf32, #tpu.memory_space<vmem>>, vector<1x64xf32>,
    %44 = vector.extract_strided_slice %35 {offsets = [1, 0], sizes = [1, 64], strides = [1, 1]} : vector<4x256xf32> to vector<1x64xf32>
    %c0_29 = arith.constant 0 : index
    %c64 = arith.constant 64 : index
    %45 = vector.load %arg13[%c0_29, %c64] : memref<4x256xf32, #tpu.memory_space<vmem>>, vector<1x64xf32>
    tpu.vector_store %arg13[%c0_29, %c64], %44 {strides = array<i32>} : memref<4x256xf32, #tpu.memory_space<vmem>>, vector<1x64xf32>,
    %46 = vector.extract_strided_slice %35 {offsets = [1, 64], sizes = [1, 64], strides = [1, 1]} : vector<4x256xf32> to vector<1x64xf32>
    %c1_30 = arith.constant 1 : index
    %c64_31 = arith.constant 64 : index
    %47 = vector.load %arg13[%c1_30, %c64_31] : memref<4x256xf32, #tpu.memory_space<vmem>>, vector<1x64xf32>
    tpu.vector_store %arg13[%c1_30, %c64_31], %46 {strides = array<i32>} : memref<4x256xf32, #tpu.memory_space<vmem>>, vector<1x64xf32>,
    %48 = vector.extract_strided_slice %35 {offsets = [1, 128], sizes = [1, 64], strides = [1, 1]} : vector<4x256xf32> to vector<1x64xf32>
    %c2_32 = arith.constant 2 : index
    %c64_33 = arith.constant 64 : index
    %49 = vector.load %arg13[%c2_32, %c64_33] : memref<4x256xf32, #tpu.memory_space<vmem>>, vector<1x64xf32>
    tpu.vector_store %arg13[%c2_32, %c64_33], %48 {strides = array<i32>} : memref<4x256xf32, #tpu.memory_space<vmem>>, vector<1x64xf32>,
    %50 = vector.extract_strided_slice %35 {offsets = [1, 192], sizes = [1, 64], strides = [1, 1]} : vector<4x256xf32> to vector<1x64xf32>
    %c3_34 = arith.constant 3 : index
    %c64_35 = arith.constant 64 : index
    %51 = vector.load %arg13[%c3_34, %c64_35] : memref<4x256xf32, #tpu.memory_space<vmem>>, vector<1x64xf32>
    tpu.vector_store %arg13[%c3_34, %c64_35], %50 {strides = array<i32>} : memref<4x256xf32, #tpu.memory_space<vmem>>, vector<1x64xf32>,
    %52 = vector.extract_strided_slice %35 {offsets = [2, 0], sizes = [1, 64], strides = [1, 1]} : vector<4x256xf32> to vector<1x64xf32>
    %c0_36 = arith.constant 0 : index
    %c128 = arith.constant 128 : index
    %53 = vector.load %arg13[%c0_36, %c128] : memref<4x256xf32, #tpu.memory_space<vmem>>, vector<1x64xf32>
    tpu.vector_store %arg13[%c0_36, %c128], %52 {strides = array<i32>} : memref<4x256xf32, #tpu.memory_space<vmem>>, vector<1x64xf32>,
    %54 = vector.extract_strided_slice %35 {offsets = [2, 64], sizes = [1, 64], strides = [1, 1]} : vector<4x256xf32> to vector<1x64xf32>
    %c1_37 = arith.constant 1 : index
    %c128_38 = arith.constant 128 : index
    %55 = vector.load %arg13[%c1_37, %c128_38] : memref<4x256xf32, #tpu.memory_space<vmem>>, vector<1x64xf32>
    tpu.vector_store %arg13[%c1_37, %c128_38], %54 {strides = array<i32>} : memref<4x256xf32, #tpu.memory_space<vmem>>, vector<1x64xf32>,
    %56 = vector.extract_strided_slice %35 {offsets = [2, 128], sizes = [1, 64], strides = [1, 1]} : vector<4x256xf32> to vector<1x64xf32>
    %c2_39 = arith.constant 2 : index
    %c128_40 = arith.constant 128 : index
    %57 = vector.load %arg13[%c2_39, %c128_40] : memref<4x256xf32, #tpu.memory_space<vmem>>, vector<1x64xf32>
    tpu.vector_store %arg13[%c2_39, %c128_40], %56 {strides = array<i32>} : memref<4x256xf32, #tpu.memory_space<vmem>>, vector<1x64xf32>,
    %58 = vector.extract_strided_slice %35 {offsets = [2, 192], sizes = [1, 64], strides = [1, 1]} : vector<4x256xf32> to vector<1x64xf32>
    %c3_41 = arith.constant 3 : index
    %c128_42 = arith.constant 128 : index
    %59 = vector.load %arg13[%c3_41, %c128_42] : memref<4x256xf32, #tpu.memory_space<vmem>>, vector<1x64xf32>
    tpu.vector_store %arg13[%c3_41, %c128_42], %58 {strides = array<i32>} : memref<4x256xf32, #tpu.memory_space<vmem>>, vector<1x64xf32>,
    %60 = vector.extract_strided_slice %35 {offsets = [3, 0], sizes = [1, 64], strides = [1, 1]} : vector<4x256xf32> to vector<1x64xf32>
    %c0_43 = arith.constant 0 : index
    %c192 = arith.constant 192 : index
    %61 = vector.load %arg13[%c0_43, %c192] : memref<4x256xf32, #tpu.memory_space<vmem>>, vector<1x64xf32>
    tpu.vector_store %arg13[%c0_43, %c192], %60 {strides = array<i32>} : memref<4x256xf32, #tpu.memory_space<vmem>>, vector<1x64xf32>,
    %62 = vector.extract_strided_slice %35 {offsets = [3, 64], sizes = [1, 64], strides = [1, 1]} : vector<4x256xf32> to vector<1x64xf32>
    %c1_44 = arith.constant 1 : index
    %c192_45 = arith.constant 192 : index
    %63 = vector.load %arg13[%c1_44, %c192_45] : memref<4x256xf32, #tpu.memory_space<vmem>>, vector<1x64xf32>
    tpu.vector_store %arg13[%c1_44, %c192_45], %62 {strides = array<i32>} : memref<4x256xf32, #tpu.memory_space<vmem>>, vector<1x64xf32>,
    %64 = vector.extract_strided_slice %35 {offsets = [3, 128], sizes = [1, 64], strides = [1, 1]} : vector<4x256xf32> to vector<1x64xf32>
    %c2_46 = arith.constant 2 : index
    %c192_47 = arith.constant 192 : index
    %65 = vector.load %arg13[%c2_46, %c192_47] : memref<4x256xf32, #tpu.memory_space<vmem>>, vector<1x64xf32>
    tpu.vector_store %arg13[%c2_46, %c192_47], %64 {strides = array<i32>} : memref<4x256xf32, #tpu.memory_space<vmem>>, vector<1x64xf32>,
    %66 = vector.extract_strided_slice %35 {offsets = [3, 192], sizes = [1, 64], strides = [1, 1]} : vector<4x256xf32> to vector<1x64xf32>
    %c3_48 = arith.constant 3 : index
    %c192_49 = arith.constant 192 : index
    %67 = vector.load %arg13[%c3_48, %c192_49] : memref<4x256xf32, #tpu.memory_space<vmem>>, vector<1x64xf32>
    tpu.vector_store %arg13[%c3_48, %c192_49], %66 {strides = array<i32>} : memref<4x256xf32, #tpu.memory_space<vmem>>, vector<1x64xf32>,
    %c0_50 = arith.constant 0 : index
    %c0_51 = arith.constant 0 : index
    %68 = vector.load %arg13[%c0_50, %c0_51] : memref<4x256xf32, #tpu.memory_space<vmem>>, vector<4x256xf32>
    %c0_52 = arith.constant 0 : index
    %c0_53 = arith.constant 0 : index
    %69 = vector.load %arg5[%c0_52, %c0_53] : memref<4x4xf32, #tpu.memory_space<vmem>>, vector<4x4xf32>
    %cst_54 = arith.constant dense<0.000000e+00> : vector<4x256xf32>
    %70 = tpu.matmul %69, %68, %cst_54 {dimension_numbers = #tpu.dot_dimension_numbers<[1], [0], [0], [1], [0, 0, 1, 1], [], []>} : vector<4x4xf32>, vector<4x256xf32>, vector<4x256xf32> -> vector<4x256xf32>
    %c0_55 = arith.constant 0 : index
    %c0_56 = arith.constant 0 : index
    %71 = vector.load %arg10[%c0_55, %c0_56] : memref<4x256xf32, #tpu.memory_space<vmem>>, vector<4x256xf32>
    %72 = arith.addf %70, %71 : vector<4x256xf32>
    %cst_57 = arith.constant 0.00999999977 : f32
    %73 = vector.broadcast %cst_57 : f32 to vector<4x256xf32>
    %74 = arith.mulf %73, %72 : vector<4x256xf32>
    %75 = arith.maximumf %72, %74 : vector<4x256xf32>
    %c0_58 = arith.constant 0 : index
    %c0_59 = arith.constant 0 : index
    %76 = vector.load %arg6[%c0_58, %c0_59] : memref<4x4xf32, #tpu.memory_space<vmem>>, vector<4x4xf32>
    %cst_60 = arith.constant dense<0.000000e+00> : vector<4x256xf32>
    %77 = tpu.matmul %76, %75, %cst_60 {dimension_numbers = #tpu.dot_dimension_numbers<[1], [0], [0], [1], [0, 0, 1, 1], [], []>} : vector<4x4xf32>, vector<4x256xf32>, vector<4x256xf32> -> vector<4x256xf32>
    %c0_61 = arith.constant 0 : index
    %c0_62 = arith.constant 0 : index
    %78 = vector.load %arg11[%c0_61, %c0_62] : memref<4x256xf32, #tpu.memory_space<vmem>>, vector<4x256xf32>
    %79 = arith.addf %77, %78 : vector<4x256xf32>
    %c0_63 = arith.constant 0 : index
    %c0_64 = arith.constant 0 : index
    %c0_65 = arith.constant 0 : index
    %80 = vector.load %arg12[%c0_63, %c0_64, %c0_65] : memref<1x4x256xf32, #tpu.memory_space<vmem>>, vector<1x4x256xf32>
    %81 = vector.shape_cast %80 : vector<1x4x256xf32> to vector<4x256xf32>
    %82 = vector.shape_cast %79 : vector<4x256xf32> to vector<1x4x256xf32>
    tpu.vector_store %arg12[%c0_63, %c0_64, %c0_65], %82 {strides = array<i32>} : memref<1x4x256xf32, #tpu.memory_space<vmem>>, vector<1x4x256xf32>,
    return
  }
  func.func @transform_0(%arg0: i32) -> (i32, i32, i32) {
    %c0_i32 = arith.constant 0 : i32
    %c0_i32_0 = arith.constant 0 : i32
    %c0_i32_1 = arith.constant 0 : i32
    return %arg0, %c0_i32, %c0_i32_0 : i32, i32, i32
  }
  func.func @transform_1(%arg0: i32) -> (i32, i32, i32) {
    %c0_i32 = arith.constant 0 : i32
    %c0_i32_0 = arith.constant 0 : i32
    %c0_i32_1 = arith.constant 0 : i32
    return %arg0, %c0_i32, %c0_i32_0 : i32, i32, i32
  }
  func.func @transform_2(%arg0: i32) -> (i32, i32) {
    %c0_i32 = arith.constant 0 : i32
    %c0_i32_0 = arith.constant 0 : i32
    %c0_i32_1 = arith.constant 0 : i32
    return %c0_i32, %c0_i32_0 : i32, i32
  }
  func.func @transform_3(%arg0: i32) -> (i32, i32) {
    %c0_i32 = arith.constant 0 : i32
    %c0_i32_0 = arith.constant 0 : i32
    %c0_i32_1 = arith.constant 0 : i32
    return %c0_i32, %c0_i32_0 : i32, i32
  }
  func.func @transform_4(%arg0: i32) -> (i32, i32) {
    %c0_i32 = arith.constant 0 : i32
    %c0_i32_0 = arith.constant 0 : i32
    %c0_i32_1 = arith.constant 0 : i32
    return %c0_i32, %c0_i32_0 : i32, i32
  }
  func.func @transform_5(%arg0: i32) -> (i32, i32) {
    %c0_i32 = arith.constant 0 : i32
    %c0_i32_0 = arith.constant 0 : i32
    %c0_i32_1 = arith.constant 0 : i32
    return %c0_i32, %c0_i32_0 : i32, i32
  }
  func.func @transform_6(%arg0: i32) -> (i32, i32) {
    %c0_i32 = arith.constant 0 : i32
    %c0_i32_0 = arith.constant 0 : i32
    %c0_i32_1 = arith.constant 0 : i32
    return %c0_i32, %c0_i32_0 : i32, i32
  }
  func.func @transform_7(%arg0: i32) -> (i32, i32) {
    %c0_i32 = arith.constant 0 : i32
    %c0_i32_0 = arith.constant 0 : i32
    %c0_i32_1 = arith.constant 0 : i32
    return %c0_i32, %c0_i32_0 : i32, i32
  }
  func.func @transform_8(%arg0: i32) -> (i32, i32) {
    %c0_i32 = arith.constant 0 : i32
    %c0_i32_0 = arith.constant 0 : i32
    %c0_i32_1 = arith.constant 0 : i32
    return %c0_i32, %c0_i32_0 : i32, i32
  }
  func.func @transform_9(%arg0: i32) -> (i32, i32) {
    %c0_i32 = arith.constant 0 : i32
    %c0_i32_0 = arith.constant 0 : i32
    %c0_i32_1 = arith.constant 0 : i32
    return %c0_i32, %c0_i32_0 : i32, i32
  }
  func.func @transform_10(%arg0: i32) -> (i32, i32) {
    %c0_i32 = arith.constant 0 : i32
    %c0_i32_0 = arith.constant 0 : i32
    %c0_i32_1 = arith.constant 0 : i32
    return %c0_i32, %c0_i32_0 : i32, i32
  }
  func.func @transform_11(%arg0: i32) -> (i32, i32, i32) {
    %c0_i32 = arith.constant 0 : i32
    %c0_i32_0 = arith.constant 0 : i32
    %c0_i32_1 = arith.constant 0 : i32
    return %arg0, %c0_i32, %c0_i32_0 : i32, i32, i32
  }
}

</mosaic_0001>

<llo_original>
// kernel: cross_attention_forward.1
$region0: #{cross_attention_forward.1}
  #allocation0 [shape = 'u32[]', space=smem, size = 0x4, offset = 0x4, fixed_abs, tag = 'smem constant byte address 0x4 - core index']
  #allocation1 [shape = 'u32[144,128]{1,0:T(1,128)}', space=vmem, size = 0x12000, scoped, tag = 'internal scratch']
  #allocation2 [shape = 'f32[4,256]{1,0:T(4,128)}', space=vmem, size = 0x1000, scoped, tag = 'scratch operand']
  %s0 = inlined_call_operand.vmem [shape: f32[2,4,256], index: 0, kind: input, shape index: {}]
  %s1 = inlined_call_operand.vmem [shape: f32[2,8,256], index: 1, kind: input, shape index: {}]
  %s2 = inlined_call_operand.vmem [shape: f32[12,4], index: 2, kind: input, shape index: {}]
  %s3 = inlined_call_operand.vmem [shape: f32[8,8], index: 3, kind: input, shape index: {}]
  %s4 = inlined_call_operand.vmem [shape: f32[4,4], index: 4, kind: input, shape index: {}]
  %s5 = inlined_call_operand.vmem [shape: f32[4,4], index: 5, kind: input, shape index: {}]
  %s6 = inlined_call_operand.vmem [shape: f32[12,256], index: 6, kind: input, shape index: {}]
  %s7 = inlined_call_operand.vmem [shape: f32[8,256], index: 7, kind: input, shape index: {}]
  %s8 = inlined_call_operand.vmem [shape: f32[2,256], index: 8, kind: input, shape index: {}]
  %s9 = inlined_call_operand.vmem [shape: f32[4,256], index: 9, kind: input, shape index: {}]
  %s10 = inlined_call_operand.vmem [shape: f32[4,256], index: 10, kind: input, shape index: {}]
  %s11 = inlined_call_operand.vmem [shape: f32[2,4,256], index: 11, kind: output, shape index: {}]
  %s12 = sld [smem:[#allocation0]]
  $region77: #{cross_attention_forward.1} parent=0
    _
  %s14 = ssub.s32 1, %s12
  %s15 = scalar_select 0, %s14, %s12
  loop: start=0, step=1, limit=4
  $region2: #{cross_attention_forward.1} parent=0 // loop_pre_header
    _
  $region3: #{cross_attention_forward.1} parent=0 // loop_header
    %s17 = sphi 0, %s21
    %p18 = scmp.ge.s32.totalorder %s17, 4
    %s27 = sphi 0, %s29
    %s30 = sphi 0, %s27
    %s31 = sphi 0, %s30
    %s47 = sphi 0, %s31
    %s53 = sphi 0, %s55
    %s56 = sphi 0, %s53
    %s57 = sphi 0, %s56
    %s73 = sphi 0, %s57
    %s77 = sphi 0, %s77
    %s79 = sphi 0, %s77
    %s80 = sphi 0, %s79
    %s94 = sphi 0, %s80
    %s98 = sphi 0, %s98
    %s100 = sphi 0, %s98
    %s101 = sphi 0, %s100
    %s115 = sphi 0, %s101
    %s119 = sphi 0, %s119
    %s121 = sphi 0, %s119
    %s122 = sphi 0, %s121
    %s136 = sphi 0, %s122
    %s140 = sphi 0, %s140
    %s142 = sphi 0, %s140
    %s143 = sphi 0, %s142
    %s157 = sphi 0, %s143
    %s161 = sphi 0, %s161
    %s163 = sphi 0, %s161
    %s164 = sphi 0, %s163
    %s178 = sphi 0, %s164
    %s182 = sphi 0, %s182
    %s184 = sphi 0, %s182
    %s185 = sphi 0, %s184
    %s199 = sphi 0, %s185
    %s203 = sphi 0, %s203
    %s205 = sphi 0, %s203
    %s206 = sphi 0, %s205
    %s220 = sphi 0, %s206
    %s224 = sphi 0, %s224
    %s226 = sphi 0, %s224
    %s227 = sphi 0, %s226
    %s241 = sphi 0, %s227
    %s245 = sphi 0, %s245
    %s247 = sphi 0, %s245
    %s248 = sphi 0, %s247
    %s262 = sphi 0, %s248
    %s268 = sphi 0, %s270
    %s271 = sphi 0, %s268
    %s272 = sphi 0, %s271
    %s288 = sphi 0, %s272
  $region4: #{cross_attention_forward.1} parent=0 // loop_header_branch
    %20 = sbr.rel (%p18) target = $region8
  $region5: #{cross_attention_forward.1} parent=0 // loop_body
    %s22 = ssub.s32 %s17, 1
    %s23 = ssub.s32 %s17, 2
    %s24 = sadd.s32 %s17, 1
    %s25 = ssub.s32 %s17, %s24
    %p26 = scmp.eq.s32.totalorder %s25, 0
    %s28 = sadd.s32 %s27, 1
    %s29 = scalar_select %p26, %s27, %s28
    %p32 = pneg %p26
    %p33 = scmp.eq.s32.totalorder %s17, 1
    %p34 = por %p32, %p33
    %p35 = scmp.ne.s32.totalorder %s27, %s30
    %p36 = scmp.eq.s32.totalorder %s17, 0
    %p37 = por %p35, %p36
    %p38 = scmp.ne.s32.totalorder %s27, %s30
    %p39 = scmp.eq.s32.totalorder %s22, 1
    %p40 = por %p38, %p39
    %p41 = scmp.ne.s32.totalorder %s30, %s31
    %p42 = scmp.eq.s32.totalorder %s22, 0
    %p43 = por %p41, %p42
    %p44 = scmp.ne.s32.totalorder %s30, %s31
    %p45 = scmp.eq.s32.totalorder %s23, 1
    %p46 = por %p44, %p45
    %p48 = scmp.ne.s32.totalorder %s31, %s47
    %p49 = scmp.eq.s32.totalorder %s23, 0
    %p50 = por %p48, %p49
    %s51 = ssub.s32 %s17, %s24
    %p52 = scmp.eq.s32.totalorder %s51, 0
    %s54 = sadd.s32 %s53, 1
    %s55 = scalar_select %p52, %s53, %s54
    %p58 = pneg %p52
    %p59 = scmp.eq.s32.totalorder %s17, 1
    %p60 = por %p58, %p59
    %p61 = scmp.ne.s32.totalorder %s53, %s56
    %p62 = scmp.eq.s32.totalorder %s17, 0
    %p63 = por %p61, %p62
    %p64 = scmp.ne.s32.totalorder %s53, %s56
    %p65 = scmp.eq.s32.totalorder %s22, 1
    %p66 = por %p64, %p65
    %p67 = scmp.ne.s32.totalorder %s56, %s57
    %p68 = scmp.eq.s32.totalorder %s22, 0
    %p69 = por %p67, %p68
    %p70 = scmp.ne.s32.totalorder %s56, %s57
    %p71 = scmp.eq.s32.totalorder %s23, 1
    %p72 = por %p70, %p71
    %p74 = scmp.ne.s32.totalorder %s57, %s73
    %p75 = scmp.eq.s32.totalorder %s23, 0
    %p76 = por %p74, %p75
    %s78 = sadd.s32 %s77, 1
    %p81 = scmp.eq.s32.totalorder %s17, 1
    %p82 = scmp.ne.s32.totalorder %s77, %s79
    %p83 = scmp.eq.s32.totalorder %s17, 0
    %p84 = por %p82, %p83
    %p85 = scmp.ne.s32.totalorder %s77, %s79
    %p86 = scmp.eq.s32.totalorder %s22, 1
    %p87 = por %p85, %p86
    %p88 = scmp.ne.s32.totalorder %s79, %s80
    %p89 = scmp.eq.s32.totalorder %s22, 0
    %p90 = por %p88, %p89
    %p91 = scmp.ne.s32.totalorder %s79, %s80
    %p92 = scmp.eq.s32.totalorder %s23, 1
    %p93 = por %p91, %p92
    %p95 = scmp.ne.s32.totalorder %s80, %s94
    %p96 = scmp.eq.s32.totalorder %s23, 0
    %p97 = por %p95, %p96
    %s99 = sadd.s32 %s98, 1
    %p102 = scmp.eq.s32.totalorder %s17, 1
    %p103 = scmp.ne.s32.totalorder %s98, %s100
    %p104 = scmp.eq.s32.totalorder %s17, 0
    %p105 = por %p103, %p104
    %p106 = scmp.ne.s32.totalorder %s98, %s100
    %p107 = scmp.eq.s32.totalorder %s22, 1
    %p108 = por %p106, %p107
    %p109 = scmp.ne.s32.totalorder %s100, %s101
    %p110 = scmp.eq.s32.totalorder %s22, 0
    %p111 = por %p109, %p110
    %p112 = scmp.ne.s32.totalorder %s100, %s101
    %p113 = scmp.eq.s32.totalorder %s23, 1
    %p114 = por %p112, %p113
    %p116 = scmp.ne.s32.totalorder %s101, %s115
    %p117 = scmp.eq.s32.totalorder %s23, 0
    %p118 = por %p116, %p117
    %s120 = sadd.s32 %s119, 1
    %p123 = scmp.eq.s32.totalorder %s17, 1
    %p124 = scmp.ne.s32.totalorder %s119, %s121
    %p125 = scmp.eq.s32.totalorder %s17, 0
    %p126 = por %p124, %p125
    %p127 = scmp.ne.s32.totalorder %s119, %s121
    %p128 = scmp.eq.s32.totalorder %s22, 1
    %p129 = por %p127, %p128
    %p130 = scmp.ne.s32.totalorder %s121, %s122
    %p131 = scmp.eq.s32.totalorder %s22, 0
    %p132 = por %p130, %p131
    %p133 = scmp.ne.s32.totalorder %s121, %s122
    %p134 = scmp.eq.s32.totalorder %s23, 1
    %p135 = por %p133, %p134
    %p137 = scmp.ne.s32.totalorder %s122, %s136
    %p138 = scmp.eq.s32.totalorder %s23, 0
    %p139 = por %p137, %p138
    %s141 = sadd.s32 %s140, 1
    %p144 = scmp.eq.s32.totalorder %s17, 1
    %p145 = scmp.ne.s32.totalorder %s140, %s142
    %p146 = scmp.eq.s32.totalorder %s17, 0
    %p147 = por %p145, %p146
    %p148 = scmp.ne.s32.totalorder %s140, %s142
    %p149 = scmp.eq.s32.totalorder %s22, 1
    %p150 = por %p148, %p149
    %p151 = scmp.ne.s32.totalorder %s142, %s143
    %p152 = scmp.eq.s32.totalorder %s22, 0
    %p153 = por %p151, %p152
    %p154 = scmp.ne.s32.totalorder %s142, %s143
    %p155 = scmp.eq.s32.totalorder %s23, 1
    %p156 = por %p154, %p155
    %p158 = scmp.ne.s32.totalorder %s143, %s157
    %p159 = scmp.eq.s32.totalorder %s23, 0
    %p160 = por %p158, %p159
    %s162 = sadd.s32 %s161, 1
    %p165 = scmp.eq.s32.totalorder %s17, 1
    %p166 = scmp.ne.s32.totalorder %s161, %s163
    %p167 = scmp.eq.s32.totalorder %s17, 0
    %p168 = por %p166, %p167
    %p169 = scmp.ne.s32.totalorder %s161, %s163
    %p170 = scmp.eq.s32.totalorder %s22, 1
    %p171 = por %p169, %p170
    %p172 = scmp.ne.s32.totalorder %s163, %s164
    %p173 = scmp.eq.s32.totalorder %s22, 0
    %p174 = por %p172, %p173
    %p175 = scmp.ne.s32.totalorder %s163, %s164
    %p176 = scmp.eq.s32.totalorder %s23, 1
    %p177 = por %p175, %p176
    %p179 = scmp.ne.s32.totalorder %s164, %s178
    %p180 = scmp.eq.s32.totalorder %s23, 0
    %p181 = por %p179, %p180
    %s183 = sadd.s32 %s182, 1
    %p186 = scmp.eq.s32.totalorder %s17, 1
    %p187 = scmp.ne.s32.totalorder %s182, %s184
    %p188 = scmp.eq.s32.totalorder %s17, 0
    %p189 = por %p187, %p188
    %p190 = scmp.ne.s32.totalorder %s182, %s184
    %p191 = scmp.eq.s32.totalorder %s22, 1
    %p192 = por %p190, %p191
    %p193 = scmp.ne.s32.totalorder %s184, %s185
    %p194 = scmp.eq.s32.totalorder %s22, 0
    %p195 = por %p193, %p194
    %p196 = scmp.ne.s32.totalorder %s184, %s185
    %p197 = scmp.eq.s32.totalorder %s23, 1
    %p198 = por %p196, %p197
    %p200 = scmp.ne.s32.totalorder %s185, %s199
    %p201 = scmp.eq.s32.totalorder %s23, 0
    %p202 = por %p200, %p201
    %s204 = sadd.s32 %s203, 1
    %p207 = scmp.eq.s32.totalorder %s17, 1
    %p208 = scmp.ne.s32.totalorder %s203, %s205
    %p209 = scmp.eq.s32.totalorder %s17, 0
    %p210 = por %p208, %p209
    %p211 = scmp.ne.s32.totalorder %s203, %s205
    %p212 = scmp.eq.s32.totalorder %s22, 1
    %p213 = por %p211, %p212
    %p214 = scmp.ne.s32.totalorder %s205, %s206
    %p215 = scmp.eq.s32.totalorder %s22, 0
    %p216 = por %p214, %p215
    %p217 = scmp.ne.s32.totalorder %s205, %s206
    %p218 = scmp.eq.s32.totalorder %s23, 1
    %p219 = por %p217, %p218
    %p221 = scmp.ne.s32.totalorder %s206, %s220
    %p222 = scmp.eq.s32.totalorder %s23, 0
    %p223 = por %p221, %p222
    %s225 = sadd.s32 %s224, 1
    %p228 = scmp.eq.s32.totalorder %s17, 1
    %p229 = scmp.ne.s32.totalorder %s224, %s226
    %p230 = scmp.eq.s32.totalorder %s17, 0
    %p231 = por %p229, %p230
    %p232 = scmp.ne.s32.totalorder %s224, %s226
    %p233 = scmp.eq.s32.totalorder %s22, 1
    %p234 = por %p232, %p233
    %p235 = scmp.ne.s32.totalorder %s226, %s227
    %p236 = scmp.eq.s32.totalorder %s22, 0
    %p237 = por %p235, %p236
    %p238 = scmp.ne.s32.totalorder %s226, %s227
    %p239 = scmp.eq.s32.totalorder %s23, 1
    %p240 = por %p238, %p239
    %p242 = scmp.ne.s32.totalorder %s227, %s241
    %p243 = scmp.eq.s32.totalorder %s23, 0
    %p244 = por %p242, %p243
    %s246 = sadd.s32 %s245, 1
    %p249 = scmp.eq.s32.totalorder %s17, 1
    %p250 = scmp.ne.s32.totalorder %s245, %s247
    %p251 = scmp.eq.s32.totalorder %s17, 0
    %p252 = por %p250, %p251
    %p253 = scmp.ne.s32.totalorder %s245, %s247
    %p254 = scmp.eq.s32.totalorder %s22, 1
    %p255 = por %p253, %p254
    %p256 = scmp.ne.s32.totalorder %s247, %s248
    %p257 = scmp.eq.s32.totalorder %s22, 0
    %p258 = por %p256, %p257
    %p259 = scmp.ne.s32.totalorder %s247, %s248
    %p260 = scmp.eq.s32.totalorder %s23, 1
    %p261 = por %p259, %p260
    %p263 = scmp.ne.s32.totalorder %s248, %s262
    %p264 = scmp.eq.s32.totalorder %s23, 0
    %p265 = por %p263, %p264
    %s266 = ssub.s32 %s17, %s24
    %p267 = scmp.eq.s32.totalorder %s266, 0
    %s269 = sadd.s32 %s268, 1
    %s270 = scalar_select %p267, %s268, %s269
    %p273 = pneg %p267
    %p274 = scmp.eq.s32.totalorder %s17, 1
    %p275 = por %p273, %p274
    %p276 = scmp.ne.s32.totalorder %s268, %s271
    %p277 = scmp.eq.s32.totalorder %s17, 0
    %p278 = por %p276, %p277
    %p279 = scmp.ne.s32.totalorder %s268, %s271
    %p280 = scmp.eq.s32.totalorder %s22, 1
    %p281 = por %p279, %p280
    %p282 = scmp.ne.s32.totalorder %s271, %s272
    %p283 = scmp.eq.s32.totalorder %s22, 0
    %p284 = por %p282, %p283
    %p285 = scmp.ne.s32.totalorder %s271, %s272
    %p286 = scmp.eq.s32.totalorder %s23, 1
    %p287 = por %p285, %p286
    %p289 = scmp.ne.s32.totalorder %s272, %s288
    %p290 = scmp.eq.s32.totalorder %s23, 0
    %p291 = por %p289, %p290
    %p292 = scmp.le.s32.totalorder 1, %s17
    %p293 = scmp.lt.s32.totalorder %s17, 3
    %p294 = pnand %p292, %p293
    %p295 = pneg %p294
    // Predicated region
    $region9: #{cross_attention_forward.1} parent=5 // pred_check
      _
    $region10: #{cross_attention_forward.1} parent=5 // pred_check_branch
      %297 = sbr.rel (%p294) target = $region12
    $region11: #{cross_attention_forward.1} parent=5 // pred_region
      %s298 = ssub.s32 %s17, 1
      // Predicated region
      $region13: #{cross_attention_forward.1} parent=11 // pred_check
        %p299 = pneg %p90
      $region14: #{cross_attention_forward.1} parent=11 // pred_check_branch
        %301 = sbr.rel (%p299) target = $region16
      $region15: #{cross_attention_forward.1} parent=11 // pred_region
        _
      $region16: #{cross_attention_forward.1} parent=11 // pred_fallthru
        _
      // Predicated region
      $region17: #{cross_attention_forward.1} parent=11 // pred_check
        %p302 = pneg %p111
      $region18: #{cross_attention_forward.1} parent=11 // pred_check_branch
        %304 = sbr.rel (%p302) target = $region20
      $region19: #{cross_attention_forward.1} parent=11 // pred_region
        _
      $region20: #{cross_attention_forward.1} parent=11 // pred_fallthru
        _
      // Predicated region
      $region21: #{cross_attention_forward.1} parent=11 // pred_check
        %p305 = pneg %p132
      $region22: #{cross_attention_forward.1} parent=11 // pred_check_branch
        %307 = sbr.rel (%p305) target = $region24
      $region23: #{cross_attention_forward.1} parent=11 // pred_region
        _
      $region24: #{cross_attention_forward.1} parent=11 // pred_fallthru
        _
      // Predicated region
      $region25: #{cross_attention_forward.1} parent=11 // pred_check
        %p308 = pneg %p153
      $region26: #{cross_attention_forward.1} parent=11 // pred_check_branch
        %310 = sbr.rel (%p308) target = $region28
      $region27: #{cross_attention_forward.1} parent=11 // pred_region
        _
      $region28: #{cross_attention_forward.1} parent=11 // pred_fallthru
        _
      // Predicated region
      $region29: #{cross_attention_forward.1} parent=11 // pred_check
        %p311 = pneg %p174
      $region30: #{cross_attention_forward.1} parent=11 // pred_check_branch
        %313 = sbr.rel (%p311) target = $region32
      $region31: #{cross_attention_forward.1} parent=11 // pred_region
        _
      $region32: #{cross_attention_forward.1} parent=11 // pred_fallthru
        _
      // Predicated region
      $region33: #{cross_attention_forward.1} parent=11 // pred_check
        %p314 = pneg %p195
      $region34: #{cross_attention_forward.1} parent=11 // pred_check_branch
        %316 = sbr.rel (%p314) target = $region36
      $region35: #{cross_attention_forward.1} parent=11 // pred_region
        _
      $region36: #{cross_attention_forward.1} parent=11 // pred_fallthru
        _
      // Predicated region
      $region37: #{cross_attention_forward.1} parent=11 // pred_check
        %p317 = pneg %p216
      $region38: #{cross_attention_forward.1} parent=11 // pred_check_branch
        %319 = sbr.rel (%p317) target = $region40
      $region39: #{cross_attention_forward.1} parent=11 // pred_region
        _
      $region40: #{cross_attention_forward.1} parent=11 // pred_fallthru
        _
      // Predicated region
      $region41: #{cross_attention_forward.1} parent=11 // pred_check
        %p320 = pneg %p237
      $region42: #{cross_attention_forward.1} parent=11 // pred_check_branch
        %322 = sbr.rel (%p320) target = $region44
      $region43: #{cross_attention_forward.1} parent=11 // pred_region
        _
      $region44: #{cross_attention_forward.1} parent=11 // pred_fallthru
        _
      // Predicated region
      $region45: #{cross_attention_forward.1} parent=11 // pred_check
        %p323 = pneg %p258
      $region46: #{cross_attention_forward.1} parent=11 // pred_check_branch
        %325 = sbr.rel (%p323) target = $region48
      $region47: #{cross_attention_forward.1} parent=11 // pred_region
        _
      $region48: #{cross_attention_forward.1} parent=11 // pred_fallthru
        _
    $region12: #{cross_attention_forward.1} parent=5 // pred_fallthru
      _
    %p326 = scmp.lt.s32.totalorder %s17, 2
    // Predicated region
    $region49: #{cross_attention_forward.1} parent=5 // pred_check
      %p327 = pneg %p326
    $region50: #{cross_attention_forward.1} parent=5 // pred_check_branch
      %329 = sbr.rel (%p327) target = $region52
    $region51: #{cross_attention_forward.1} parent=5 // pred_region
      // Predicated region
      $region53: #{cross_attention_forward.1} parent=51 // pred_check
        %p330 = pneg %p37
      $region54: #{cross_attention_forward.1} parent=51 // pred_check_branch
        %332 = sbr.rel (%p330) target = $region56
      $region55: #{cross_attention_forward.1} parent=51 // pred_region
        %p333 = scmp.lt.s32.totalorder %s17, 1
        %s334 = scalar_select %p333, %s17, 1
        %s335 = smul.addr %s334, 2
        %s336 = smul.addr %s335, 4
        %s337 = scalar_lea.vmem %s0, %s336
      $region56: #{cross_attention_forward.1} parent=51 // pred_fallthru
        _
      // Predicated region
      $region57: #{cross_attention_forward.1} parent=51 // pred_check
        %p338 = pneg %p63
      $region58: #{cross_attention_forward.1} parent=51 // pred_check_branch
        %340 = sbr.rel (%p338) target = $region60
      $region59: #{cross_attention_forward.1} parent=51 // pred_region
        %p341 = scmp.lt.s32.totalorder %s17, 1
        %s342 = scalar_select %p341, %s17, 1
        %s343 = smul.addr %s342, 2
        %s344 = smul.addr %s343, 8
        %s345 = scalar_lea.vmem %s1, %s344
      $region60: #{cross_attention_forward.1} parent=51 // pred_fallthru
        _
    $region52: #{cross_attention_forward.1} parent=5 // pred_fallthru
      _
    %p346 = scmp.le.s32.totalorder 1, %s17
    %p347 = scmp.lt.s32.totalorder %s17, 3
    %p348 = pnand %p346, %p347
    %p349 = pneg %p348
    // Predicated region
    $region61: #{cross_attention_forward.1} parent=5 // pred_check
      _
    $region62: #{cross_attention_forward.1} parent=5 // pred_check_branch
      %351 = sbr.rel (%p348) target = $region64
    $region63: #{cross_attention_forward.1} parent=5 // pred_region
      %s352 = ssub.s32 %s17, 1
      %p353 = scmp.lt.s32.totalorder %s22, 1
      %s354 = scalar_select %p353, %s22, 1
      %s355 = smul.addr %s354, 2
      %s356 = smul.addr %s355, 4
      %s357 = scalar_lea.vmem %s0, %s356
      %p358 = pneg %p43
      %p359 = pneg %p40
      %p360 = scmp.lt.s32.totalorder %s22, 1
      %s361 = scalar_select %p360, %s22, 1
      %s362 = smul.addr %s361, 2
      %s363 = smul.addr %s362, 8
      %s364 = scalar_lea.vmem %s1, %s363
      %p365 = pneg %p69
      %p366 = pneg %p66
      %p367 = pneg %p90
      %p368 = pneg %p87
      %p369 = pneg %p111
      %p370 = pneg %p108
      %p371 = pneg %p132
      %p372 = pneg %p129
      %p373 = pneg %p153
      %p374 = pneg %p150
      %p375 = pneg %p174
      %p376 = pneg %p171
      %p377 = pneg %p195
      %p378 = pneg %p192
      %p379 = pneg %p216
      %p380 = pneg %p213
      %p381 = pneg %p237
      %p382 = pneg %p234
      %p383 = pneg %p258
      %p384 = pneg %p255
      %p385 = pneg %p284
      %p386 = pneg %p281
      %p387 = scmp.lt.s32.totalorder %s22, 1
      %s388 = scalar_select %p387, %s22, 1
      %s389 = smul.addr %s388, 2
      %s390 = smul.addr %s389, 4
      %s391 = scalar_lea.vmem %s11, %s390
      %p392 = scmp.lt.s32.totalorder %s22, 1
      %s393 = scalar_select %p392, %s22, 1
      %s394 = smul.addr %s393, 2
      %s395 = smul.addr %s394, 4
      %s396 = scalar_lea.vmem %s0, %s395
      %p397 = scmp.lt.s32.totalorder %s22, 1
      %s398 = scalar_select %p397, %s22, 1
      %s399 = smul.addr %s398, 2
      %s400 = smul.addr %s399, 8
      %s401 = scalar_lea.vmem %s1, %s400
      %p402 = scmp.lt.s32.totalorder %s22, 1
      %s403 = scalar_select %p402, %s22, 1
      %s404 = smul.addr %s403, 2
      %s405 = smul.addr %s404, 4
      %s406 = scalar_lea.vmem %s11, %s405
      %v407 = vld [vmem:[%s396] sm:$0xff]
      %v408 = vld [vmem:[%s401] sm:$0xff]
      %v409 = vld [vmem:[%s401 + $0x8] sm:$0xff]
      %v410 = vld [vmem:[%s2] sm:$0xff]
      %v411 = vld [vmem:[%s2 + $0x8] sm:$0xf]
      %v412 = vld [vmem:[%s6] sm:$0xff]
      %v413 = vld [vmem:[%s6 + $0x8] sm:$0xff]
      %v414 = vld [vmem:[%s6 + $0x10] sm:$0xf]
      %v415 = vld [vmem:[%s6 + $0x18] sm:$0xf]
      %v417 = vcombine.high %v407, %v407
      %vm418 = vcmask 31744
      %v420 = vsel %vm418, %v410, 0
      %v423 = vsel %vm418, %v411, 0
      %vm425 = vcmask 1043456
      %v426 = vsel %vm425, %v407, 0
      %v428 = vsel %vm425, %v417, 0
      %430 = vmatprep.subr.mxu0 0.0
      %431 = vmatpush1.msra.mxu0 0.0
      %432 = vmatprep.subr.mxu0 0.0
      %433 = vmatpush1.msra.mxu0 0.0
      %434 = vmatprep.subr.mxu0 0.0
      %435 = vmatpush1.msra.mxu0 0.0
      %436 = vmatprep.subr.mxu0 0.0
      %437 = vmatpush1.msra.mxu0 0.0
      %438 = vmatprep.subr.mxu0 0.0
      %439 = vmatpush1.msra.mxu0 0.0
      %440 = vmatprep.subr.mxu0 0.0
      %441 = vmatpush1.msra.mxu0 0.0
      %442 = vmatprep.subr.mxu0 0.0
      %443 = vmatpush1.msra.mxu0 0.0
      %444 = vmatprep.subr.mxu0 0.0
      %445 = vmatpush1.msra.mxu0 0.0
      %446 = vmatprep.subr.mxu0 0.0
      %447 = vmatpush1.msra.mxu0 0.0
      %448 = vmatprep.subr.mxu0 0.0
      %449 = vmatpush1.msra.mxu0 0.0
      %450 = vmatprep.subr.mxu0 0.0
      %451 = vmatpush1.msra.mxu0 0.0
      %452 = vmatprep.subr.mxu0 0.0
      %453 = vmatpush1.msra.mxu0 0.0
      %454 = vmatprep.subr.mxu0 0.0
      %455 = vmatpush1.msra.mxu0 0.0
      %456 = vmatprep.subr.mxu0 0.0
      %457 = vmatpush1.msra.mxu0 0.0
      %458 = vmatprep.subr.mxu0 0.0
      %459 = vmatpush1.msra.mxu0 0.0
      %460 = vmatprep.subr.mxu0 %v428
      %461 = vmatpush1.msra.mxu0 %v426
      %462 = vmatprep.subr.mxu0 0.0
      %463 = vmatpush2.msra.mxu0 0.0
      %464 = vmatprep.subr.mxu0 0.0
      %465 = vmatpush2.msra.mxu0 0.0
      %466 = vmatprep.subr.mxu0 0.0
      %467 = vmatpush2.msra.mxu0 0.0
      %468 = vmatprep.subr.mxu0 0.0
      %469 = vmatpush2.msra.mxu0 0.0
      %470 = vmatprep.subr.mxu0 0.0
      %471 = vmatpush2.msra.mxu0 0.0
      %472 = vmatprep.subr.mxu0 0.0
      %473 = vmatpush2.msra.mxu0 0.0
      %474 = vmatprep.subr.mxu0 0.0
      %475 = vmatpush2.msra.mxu0 0.0
      %476 = vmatprep.subr.mxu0 0.0
      %477 = vmatpush2.msra.mxu0 0.0
      %478 = vmatprep.subr.mxu0 0.0
      %479 = vmatpush2.msra.mxu0 0.0
      %480 = vmatprep.subr.mxu0 0.0
      %481 = vmatpush2.msra.mxu0 0.0
      %482 = vmatprep.subr.mxu0 0.0
      %483 = vmatpush2.msra.mxu0 0.0
      %484 = vmatprep.subr.mxu0 0.0
      %485 = vmatpush2.msra.mxu0 0.0
      %486 = vmatprep.subr.mxu0 0.0
      %487 = vmatpush2.msra.mxu0 0.0
      %488 = vmatprep.subr.mxu0 0.0
      %489 = vmatpush2.msra.mxu0 0.0
      %490 = vmatprep.subr.mxu0 0.0
      %491 = vmatpush2.msra.mxu0 0.0
      %492 = vmatprep.subr.mxu0 0.0
      %493 = vmatpush2.msra.mxu0 0.0
      %494 = vmatprep.mubr.f32.mxu0 0.0
      %495 = vmatmul.mubr.f32.gmra.mxu0 %v420
      %v496 = vpop.f32.mrf.mxu0
      %v497 = vadd.f32 %v412, %v496
      %v498 = vpop.f32.mrf.mxu0
      %v499 = vadd.f32 %v413, %v498
      %500 = vmatprep.mubr.f32.mxu0 0.0
      %501 = vmatmul.mubr.f32.gmra.mxu0 %v423
      %v502 = vpop.f32.mrf.mxu0
      %v503 = vadd.f32 %v414, %v502
      %v504 = vpop.f32.mrf.mxu0
      %v505 = vadd.f32 %v415, %v504
      %506 = vdwg.mxu0
      %v507 = vld [vmem:[%s3] sm:$0xff]
      %v508 = vld [vmem:[%s7] sm:$0xff]
      %v509 = vld [vmem:[%s7 + $0x8] sm:$0xff]
      %vm510 = vcmask 64512
      %v512 = vsel %vm510, %v507, 0
      %514 = vmatprep.subr.mxu0 0.0
      %515 = vmatpush1.msra.mxu0 0.0
      %516 = vmatprep.subr.mxu0 0.0
      %517 = vmatpush1.msra.mxu0 0.0
      %518 = vmatprep.subr.mxu0 0.0
      %519 = vmatpush1.msra.mxu0 0.0
      %520 = vmatprep.subr.mxu0 0.0
      %521 = vmatpush1.msra.mxu0 0.0
      %522 = vmatprep.subr.mxu0 0.0
      %523 = vmatpush1.msra.mxu0 0.0
      %524 = vmatprep.subr.mxu0 0.0
      %525 = vmatpush1.msra.mxu0 0.0
      %526 = vmatprep.subr.mxu0 0.0
      %527 = vmatpush1.msra.mxu0 0.0
      %528 = vmatprep.subr.mxu0 0.0
      %529 = vmatpush1.msra.mxu0 0.0
      %530 = vmatprep.subr.mxu0 0.0
      %531 = vmatpush1.msra.mxu0 0.0
      %532 = vmatprep.subr.mxu0 0.0
      %533 = vmatpush1.msra.mxu0 0.0
      %534 = vmatprep.subr.mxu0 0.0
      %535 = vmatpush1.msra.mxu0 0.0
      %536 = vmatprep.subr.mxu0 0.0
      %537 = vmatpush1.msra.mxu0 0.0
      %538 = vmatprep.subr.mxu0 0.0
      %539 = vmatpush1.msra.mxu0 0.0
      %540 = vmatprep.subr.mxu0 0.0
      %541 = vmatpush1.msra.mxu0 0.0
      %542 = vmatprep.subr.mxu0 0.0
      %543 = vmatpush1.msra.mxu0 0.0
      %544 = vmatprep.subr.mxu0 %v409
      %545 = vmatpush1.msra.mxu0 %v408
      %546 = vmatprep.subr.mxu0 0.0
      %547 = vmatpush2.msra.mxu0 0.0
      %548 = vmatprep.subr.mxu0 0.0
      %549 = vmatpush2.msra.mxu0 0.0
      %550 = vmatprep.subr.mxu0 0.0
      %551 = vmatpush2.msra.mxu0 0.0
      %552 = vmatprep.subr.mxu0 0.0
      %553 = vmatpush2.msra.mxu0 0.0
      %554 = vmatprep.subr.mxu0 0.0
      %555 = vmatpush2.msra.mxu0 0.0
      %556 = vmatprep.subr.mxu0 0.0
      %557 = vmatpush2.msra.mxu0 0.0
      %558 = vmatprep.subr.mxu0 0.0
      %559 = vmatpush2.msra.mxu0 0.0
      %560 = vmatprep.subr.mxu0 0.0
      %561 = vmatpush2.msra.mxu0 0.0
      %562 = vmatprep.subr.mxu0 0.0
      %563 = vmatpush2.msra.mxu0 0.0
      %564 = vmatprep.subr.mxu0 0.0
      %565 = vmatpush2.msra.mxu0 0.0
      %566 = vmatprep.subr.mxu0 0.0
      %567 = vmatpush2.msra.mxu0 0.0
      %568 = vmatprep.subr.mxu0 0.0
      %569 = vmatpush2.msra.mxu0 0.0
      %570 = vmatprep.subr.mxu0 0.0
      %571 = vmatpush2.msra.mxu0 0.0
      %572 = vmatprep.subr.mxu0 0.0
      %573 = vmatpush2.msra.mxu0 0.0
      %574 = vmatprep.subr.mxu0 0.0
      %575 = vmatpush2.msra.mxu0 0.0
      %576 = vmatprep.subr.mxu0 0.0
      %577 = vmatpush2.msra.mxu0 0.0
      %578 = vmatprep.mubr.f32.mxu0 0.0
      %579 = vmatmul.mubr.f32.gmra.mxu0 %v512
      %v580 = vpop.f32.mrf.mxu0
      %v581 = vadd.f32 %v508, %v580
      %v582 = vpop.f32.mrf.mxu0
      %v583 = vadd.f32 %v509, %v582
      %584 = vdwg.mxu0
      %585 = vmatprep.subr.mxu0 0.0
      %586 = vmatpush1.xpose.msra.mxu0 0.0
      %587 = vmatprep.subr.mxu0 0.0
      %588 = vmatpush1.xpose.msra.mxu0 0.0
      %589 = vmatprep.subr.mxu0 0.0
      %590 = vmatpush1.xpose.msra.mxu0 0.0
      %591 = vmatprep.subr.mxu0 0.0
      %592 = vmatpush1.xpose.msra.mxu0 0.0
      %593 = vmatprep.subr.mxu0 0.0
      %594 = vmatpush1.xpose.msra.mxu0 0.0
      %595 = vmatprep.subr.mxu0 0.0
      %596 = vmatpush1.xpose.msra.mxu0 0.0
      %597 = vmatprep.subr.mxu0 0.0
      %598 = vmatpush1.xpose.msra.mxu0 0.0
      %599 = vmatprep.subr.mxu0 0.0
      %600 = vmatpush1.xpose.msra.mxu0 0.0
      %601 = vmatprep.subr.mxu0 0.0
      %602 = vmatpush1.xpose.msra.mxu0 0.0
      %603 = vmatprep.subr.mxu0 0.0
      %604 = vmatpush1.xpose.msra.mxu0 0.0
      %605 = vmatprep.subr.mxu0 0.0
      %606 = vmatpush1.xpose.msra.mxu0 0.0
      %607 = vmatprep.subr.mxu0 0.0
      %608 = vmatpush1.xpose.msra.mxu0 0.0
      %609 = vmatprep.subr.mxu0 0.0
      %610 = vmatpush1.xpose.msra.mxu0 0.0
      %611 = vmatprep.subr.mxu0 0.0
      %612 = vmatpush1.xpose.msra.mxu0 0.0
      %613 = vmatprep.subr.mxu0 0.0
      %614 = vmatpush1.xpose.msra.mxu0 0.0
      %615 = vmatprep.subr.mxu0 %v583
      %616 = vmatpush1.xpose.msra.mxu0 %v581
      %617 = vmatprep.subr.mxu0 0.0
      %618 = vmatpush2.xpose.msra.mxu0 0.0
      %619 = vmatprep.subr.mxu0 0.0
      %620 = vmatpush2.xpose.msra.mxu0 0.0
      %621 = vmatprep.subr.mxu0 0.0
      %622 = vmatpush2.xpose.msra.mxu0 0.0
      %623 = vmatprep.subr.mxu0 0.0
      %624 = vmatpush2.xpose.msra.mxu0 0.0
      %625 = vmatprep.subr.mxu0 0.0
      %626 = vmatpush2.xpose.msra.mxu0 0.0
      %627 = vmatprep.subr.mxu0 0.0
      %628 = vmatpush2.xpose.msra.mxu0 0.0
      %629 = vmatprep.subr.mxu0 0.0
      %630 = vmatpush2.xpose.msra.mxu0 0.0
      %631 = vmatprep.subr.mxu0 0.0
      %632 = vmatpush2.xpose.msra.mxu0 0.0
      %633 = vmatprep.subr.mxu0 0.0
      %634 = vmatpush2.xpose.msra.mxu0 0.0
      %635 = vmatprep.subr.mxu0 0.0
      %636 = vmatpush2.xpose.msra.mxu0 0.0
      %637 = vmatprep.subr.mxu0 0.0
      %638 = vmatpush2.xpose.msra.mxu0 0.0
      %639 = vmatprep.subr.mxu0 0.0
      %640 = vmatpush2.xpose.msra.mxu0 0.0
      %641 = vmatprep.subr.mxu0 0.0
      %642 = vmatpush2.xpose.msra.mxu0 0.0
      %643 = vmatprep.subr.mxu0 0.0
      %644 = vmatpush2.xpose.msra.mxu0 0.0
      %645 = vmatprep.subr.mxu0 0.0
      %646 = vmatpush2.xpose.msra.mxu0 0.0
      %647 = vmatprep.subr.mxu0 0.0
      %648 = vmatpush2.xpose.msra.mxu0 0.0
      %649 = vmatprep.mubr.f32.mxu0 %v505
      %650 = vmatmul.mubr.f32.gmra.mxu0 %v503
      %v651 = vpop.f32.mrf.mxu0
      %v652 = vadd.f32 0.0, %v651
      %v653 = vpop.f32.mrf.mxu0
      %654 = vdwg.mxu0
      %v655 = vmul.f32 %v652, 0.0625
      %vm656 = vcmask 60416
      %v657 = vsel %vm656, %v655, -inf
      %658 = vmax.xlane.f32.xlu0 %v657
      %v659 = vpop.xlane.xlu0 %658
      %v660 = vsub.f32 %v655, %v659
      %v661 = vmul.f32 %v660, 1.442695
      %v662 = vpow.pop %v661
      %v663 = vsel %vm656, %v662, 0.0
      %664 = vadd.xlane.f32.xlu0 %v663
      %v665 = vpop.xlane.xlu0 %664
      %v666 = vrcp.pop %v665
      %v667 = vmul.f32 %v662, %v666
      %v669 = vsel %vm510, %v667, 0
      %671 = vmatprep.subr.mxu0 0.0
      %672 = vmatpush1.msra.mxu0 0.0
      %673 = vmatprep.subr.mxu0 0.0
      %674 = vmatpush1.msra.mxu0 0.0
      %675 = vmatprep.subr.mxu0 0.0
      %676 = vmatpush1.msra.mxu0 0.0
      %677 = vmatprep.subr.mxu0 0.0
      %678 = vmatpush1.msra.mxu0 0.0
      %679 = vmatprep.subr.mxu0 0.0
      %680 = vmatpush1.msra.mxu0 0.0
      %681 = vmatprep.subr.mxu0 0.0
      %682 = vmatpush1.msra.mxu0 0.0
      %683 = vmatprep.subr.mxu0 0.0
      %684 = vmatpush1.msra.mxu0 0.0
      %685 = vmatprep.subr.mxu0 0.0
      %686 = vmatpush1.msra.mxu0 0.0
      %687 = vmatprep.subr.mxu0 0.0
      %688 = vmatpush1.msra.mxu0 0.0
      %689 = vmatprep.subr.mxu0 0.0
      %690 = vmatpush1.msra.mxu0 0.0
      %691 = vmatprep.subr.mxu0 0.0
      %692 = vmatpush1.msra.mxu0 0.0
      %693 = vmatprep.subr.mxu0 0.0
      %694 = vmatpush1.msra.mxu0 0.0
      %695 = vmatprep.subr.mxu0 0.0
      %696 = vmatpush1.msra.mxu0 0.0
      %697 = vmatprep.subr.mxu0 0.0
      %698 = vmatpush1.msra.mxu0 0.0
      %699 = vmatprep.subr.mxu0 0.0
      %700 = vmatpush1.msra.mxu0 0.0
      %701 = vmatprep.subr.mxu0 %v499
      %702 = vmatpush1.msra.mxu0 %v497
      %703 = vmatprep.subr.mxu0 0.0
      %704 = vmatpush2.msra.mxu0 0.0
      %705 = vmatprep.subr.mxu0 0.0
      %706 = vmatpush2.msra.mxu0 0.0
      %707 = vmatprep.subr.mxu0 0.0
      %708 = vmatpush2.msra.mxu0 0.0
      %709 = vmatprep.subr.mxu0 0.0
      %710 = vmatpush2.msra.mxu0 0.0
      %711 = vmatprep.subr.mxu0 0.0
      %712 = vmatpush2.msra.mxu0 0.0
      %713 = vmatprep.subr.mxu0 0.0
      %714 = vmatpush2.msra.mxu0 0.0
      %715 = vmatprep.subr.mxu0 0.0
      %716 = vmatpush2.msra.mxu0 0.0
      %717 = vmatprep.subr.mxu0 0.0
      %718 = vmatpush2.msra.mxu0 0.0
      %719 = vmatprep.subr.mxu0 0.0
      %720 = vmatpush2.msra.mxu0 0.0
      %721 = vmatprep.subr.mxu0 0.0
      %722 = vmatpush2.msra.mxu0 0.0
      %723 = vmatprep.subr.mxu0 0.0
      %724 = vmatpush2.msra.mxu0 0.0
      %725 = vmatprep.subr.mxu0 0.0
      %726 = vmatpush2.msra.mxu0 0.0
      %727 = vmatprep.subr.mxu0 0.0
      %728 = vmatpush2.msra.mxu0 0.0
      %729 = vmatprep.subr.mxu0 0.0
      %730 = vmatpush2.msra.mxu0 0.0
      %731 = vmatprep.subr.mxu0 0.0
      %732 = vmatpush2.msra.mxu0 0.0
      %733 = vmatprep.subr.mxu0 0.0
      %734 = vmatpush2.msra.mxu0 0.0
      %735 = vmatprep.mubr.f32.mxu0 0.0
      %736 = vmatmul.mubr.f32.gmra.mxu0 %v669
      %v737 = vpop.f32.mrf.mxu0
      %v738 = vadd.f32 0.0, %v737
      %v739 = vpop.f32.mrf.mxu0
      %v740 = vadd.f32 0.0, %v739
      %741 = vdwg.mxu0
      %v742 = vld [vmem:[%s8] ss:$2 sm:$0x3]
      %v744 = vlaneseq
      %v745 = vshrl.u32 %v744, 7
      %v746 = vsub.s32 0, %v745
      %v747 = vrot.slane %v742, %v746
      %v748 = vlaneseq
      %v749 = vshrl.u32 %v748, 7
      %v750 = vsub.s32 1, %v749
      %v751 = vrot.slane %v742, %v750
      %v754 = vmul.f32 %v738, %v747
      %v755 = vmul.f32 %v740, %v751
      %s756 = scalar_lea.vmem %s8, 1
      %v757 = vld [vmem:[%s756] ss:$2 sm:$0x3]
      %v759 = vlaneseq
      %v760 = vshrl.u32 %v759, 7
      %v761 = vsub.s32 0, %v760
      %v762 = vrot.slane %v757, %v761
      %v763 = vlaneseq
      %v764 = vshrl.u32 %v763, 7
      %v765 = vsub.s32 1, %v764
      %v766 = vrot.slane %v757, %v765
      %v769 = vadd.f32 %v754, %v762
      %v770 = vadd.f32 %v755, %v766
      %v771 = vmul.f32 %v769, 0.01
      %v772 = vmul.f32 %v770, 0.01
      %v773 = vmax.f32 %v769, %v771
      %v774 = vmax.f32 %v770, %v772
      %vm775 = vcmask 516096
      %776 = vst.msk [vmem:[#allocation2] sm:$0x1] %vm775, %v773
      %778 = vrot.lane.b32.xlu0 %v773, 64
      %v779 = vpop.permute.xlu0 %778
      %781 = vst.msk [vmem:[#allocation2 + $0x1] sm:$0x1] %vm775, %v779
      %782 = vst.msk [vmem:[#allocation2 + $0x2] sm:$0x1] %vm775, %v774
      %784 = vrot.lane.b32.xlu0 %v774, 64
      %v785 = vpop.permute.xlu0 %784
      %787 = vst.msk [vmem:[#allocation2 + $0x3] sm:$0x1] %vm775, %v785
      %v788 = vrot.slane %v773, 5
      %v789 = vrot.slane %v788, 4
      %790 = vrot.lane.b32.xlu0 %v789, 64
      %v791 = vpop.permute.xlu0 %790
      %vm793 = vcmask 1040896
      %794 = vst.msk [vmem:[#allocation2] sm:$0x1] %vm793, %v791
      %796 = vst.msk [vmem:[#allocation2 + $0x1] sm:$0x1] %vm793, %v789
      %v797 = vrot.slane %v774, 5
      %v798 = vrot.slane %v797, 4
      %799 = vrot.lane.b32.xlu0 %v798, 64
      %v800 = vpop.permute.xlu0 %799
      %802 = vst.msk [vmem:[#allocation2 + $0x2] sm:$0x1] %vm793, %v800
      %804 = vst.msk [vmem:[#allocation2 + $0x3] sm:$0x1] %vm793, %v798
      %v805 = vrot.slane %v773, 6
      %v806 = vrot.slane %v805, 4
      %808 = vst.msk [vmem:[#allocation2 + $0x4] sm:$0x1] %vm775, %v806
      %809 = vrot.lane.b32.xlu0 %v806, 64
      %v810 = vpop.permute.xlu0 %809
      %812 = vst.msk [vmem:[#allocation2 + $0x5] sm:$0x1] %vm775, %v810
      %v813 = vrot.slane %v774, 6
      %v814 = vrot.slane %v813, 4
      %816 = vst.msk [vmem:[#allocation2 + $0x6] sm:$0x1] %vm775, %v814
      %817 = vrot.lane.b32.xlu0 %v814, 64
      %v818 = vpop.permute.xlu0 %817
      %820 = vst.msk [vmem:[#allocation2 + $0x7] sm:$0x1] %vm775, %v818
      %v821 = vrot.slane %v773, 7
      %v822 = vrot.slane %v821, 4
      %823 = vrot.lane.b32.xlu0 %v822, 64
      %v824 = vpop.permute.xlu0 %823
      %826 = vst.msk [vmem:[#allocation2 + $0x4] sm:$0x1] %vm793, %v824
      %828 = vst.msk [vmem:[#allocation2 + $0x5] sm:$0x1] %vm793, %v822
      %v829 = vrot.slane %v774, 7
      %v830 = vrot.slane %v829, 4
      %831 = vrot.lane.b32.xlu0 %v830, 64
      %v832 = vpop.permute.xlu0 %831
      %834 = vst.msk [vmem:[#allocation2 + $0x6] sm:$0x1] %vm793, %v832
      %836 = vst.msk [vmem:[#allocation2 + $0x7] sm:$0x1] %vm793, %v830
      %v837 = vld [vmem:[#allocation2] sm:$0xff]
      %v838 = vld [vmem:[%s4] sm:$0xf]
      %v839 = vld [vmem:[%s9] sm:$0xff]
      %v841 = vcombine.high %v837, %v837
      %v843 = vcombine.high %v839, %v839
      %v846 = vsel %vm418, %v838, 0
      %v848 = vsel %vm425, %v837, 0
      %v850 = vsel %vm425, %v841, 0
      %852 = vmatprep.subr.mxu0 0.0
      %853 = vmatpush1.msra.mxu0 0.0
      %854 = vmatprep.subr.mxu0 0.0
      %855 = vmatpush1.msra.mxu0 0.0
      %856 = vmatprep.subr.mxu0 0.0
      %857 = vmatpush1.msra.mxu0 0.0
      %858 = vmatprep.subr.mxu0 0.0
      %859 = vmatpush1.msra.mxu0 0.0
      %860 = vmatprep.subr.mxu0 0.0
      %861 = vmatpush1.msra.mxu0 0.0
      %862 = vmatprep.subr.mxu0 0.0
      %863 = vmatpush1.msra.mxu0 0.0
      %864 = vmatprep.subr.mxu0 0.0
      %865 = vmatpush1.msra.mxu0 0.0
      %866 = vmatprep.subr.mxu0 0.0
      %867 = vmatpush1.msra.mxu0 0.0
      %868 = vmatprep.subr.mxu0 0.0
      %869 = vmatpush1.msra.mxu0 0.0
      %870 = vmatprep.subr.mxu0 0.0
      %871 = vmatpush1.msra.mxu0 0.0
      %872 = vmatprep.subr.mxu0 0.0
      %873 = vmatpush1.msra.mxu0 0.0
      %874 = vmatprep.subr.mxu0 0.0
      %875 = vmatpush1.msra.mxu0 0.0
      %876 = vmatprep.subr.mxu0 0.0
      %877 = vmatpush1.msra.mxu0 0.0
      %878 = vmatprep.subr.mxu0 0.0
      %879 = vmatpush1.msra.mxu0 0.0
      %880 = vmatprep.subr.mxu0 0.0
      %881 = vmatpush1.msra.mxu0 0.0
      %882 = vmatprep.subr.mxu0 %v850
      %883 = vmatpush1.msra.mxu0 %v848
      %884 = vmatprep.subr.mxu0 0.0
      %885 = vmatpush2.msra.mxu0 0.0
      %886 = vmatprep.subr.mxu0 0.0
      %887 = vmatpush2.msra.mxu0 0.0
      %888 = vmatprep.subr.mxu0 0.0
      %889 = vmatpush2.msra.mxu0 0.0
      %890 = vmatprep.subr.mxu0 0.0
      %891 = vmatpush2.msra.mxu0 0.0
      %892 = vmatprep.subr.mxu0 0.0
      %893 = vmatpush2.msra.mxu0 0.0
      %894 = vmatprep.subr.mxu0 0.0
      %895 = vmatpush2.msra.mxu0 0.0
      %896 = vmatprep.subr.mxu0 0.0
      %897 = vmatpush2.msra.mxu0 0.0
      %898 = vmatprep.subr.mxu0 0.0
      %899 = vmatpush2.msra.mxu0 0.0
      %900 = vmatprep.subr.mxu0 0.0
      %901 = vmatpush2.msra.mxu0 0.0
      %902 = vmatprep.subr.mxu0 0.0
      %903 = vmatpush2.msra.mxu0 0.0
      %904 = vmatprep.subr.mxu0 0.0
      %905 = vmatpush2.msra.mxu0 0.0
      %906 = vmatprep.subr.mxu0 0.0
      %907 = vmatpush2.msra.mxu0 0.0
      %908 = vmatprep.subr.mxu0 0.0
      %909 = vmatpush2.msra.mxu0 0.0
      %910 = vmatprep.subr.mxu0 0.0
      %911 = vmatpush2.msra.mxu0 0.0
      %912 = vmatprep.subr.mxu0 0.0
      %913 = vmatpush2.msra.mxu0 0.0
      %914 = vmatprep.subr.mxu0 0.0
      %915 = vmatpush2.msra.mxu0 0.0
      %916 = vmatprep.mubr.f32.mxu0 0.0
      %917 = vmatmul.mubr.f32.gmra.mxu0 %v846
      %v918 = vpop.f32.mrf.mxu0
      %v919 = vadd.f32 %v839, %v918
      %v920 = vpop.f32.mrf.mxu0
      %v921 = vadd.f32 %v843, %v920
      %922 = vdwg.mxu0
      %v923 = vmul.f32 %v919, 0.01
      %v924 = vmul.f32 %v921, 0.01
      %v925 = vmax.f32 %v919, %v923
      %v926 = vmax.f32 %v921, %v924
      %v927 = vld [vmem:[%s5] sm:$0xf]
      %v928 = vld [vmem:[%s10] sm:$0xff]
      %v930 = vcombine.high %v928, %v928
      %v933 = vsel %vm418, %v927, 0
      %v936 = vsel %vm425, %v925, 0
      %v939 = vsel %vm425, %v926, 0
      %941 = vmatprep.subr.mxu0 0.0
      %942 = vmatpush1.msra.mxu0 0.0
      %943 = vmatprep.subr.mxu0 0.0
      %944 = vmatpush1.msra.mxu0 0.0
      %945 = vmatprep.subr.mxu0 0.0
      %946 = vmatpush1.msra.mxu0 0.0
      %947 = vmatprep.subr.mxu0 0.0
      %948 = vmatpush1.msra.mxu0 0.0
      %949 = vmatprep.subr.mxu0 0.0
      %950 = vmatpush1.msra.mxu0 0.0
      %951 = vmatprep.subr.mxu0 0.0
      %952 = vmatpush1.msra.mxu0 0.0
      %953 = vmatprep.subr.mxu0 0.0
      %954 = vmatpush1.msra.mxu0 0.0
      %955 = vmatprep.subr.mxu0 0.0
      %956 = vmatpush1.msra.mxu0 0.0
      %957 = vmatprep.subr.mxu0 0.0
      %958 = vmatpush1.msra.mxu0 0.0
      %959 = vmatprep.subr.mxu0 0.0
      %960 = vmatpush1.msra.mxu0 0.0
      %961 = vmatprep.subr.mxu0 0.0
      %962 = vmatpush1.msra.mxu0 0.0
      %963 = vmatprep.subr.mxu0 0.0
      %964 = vmatpush1.msra.mxu0 0.0
      %965 = vmatprep.subr.mxu0 0.0
      %966 = vmatpush1.msra.mxu0 0.0
      %967 = vmatprep.subr.mxu0 0.0
      %968 = vmatpush1.msra.mxu0 0.0
      %969 = vmatprep.subr.mxu0 0.0
      %970 = vmatpush1.msra.mxu0 0.0
      %971 = vmatprep.subr.mxu0 %v939
      %972 = vmatpush1.msra.mxu0 %v936
      %973 = vmatprep.subr.mxu0 0.0
      %974 = vmatpush2.msra.mxu0 0.0
      %975 = vmatprep.subr.mxu0 0.0
      %976 = vmatpush2.msra.mxu0 0.0
      %977 = vmatprep.subr.mxu0 0.0
      %978 = vmatpush2.msra.mxu0 0.0
      %979 = vmatprep.subr.mxu0 0.0
      %980 = vmatpush2.msra.mxu0 0.0
      %981 = vmatprep.subr.mxu0 0.0
      %982 = vmatpush2.msra.mxu0 0.0
      %983 = vmatprep.subr.mxu0 0.0
      %984 = vmatpush2.msra.mxu0 0.0
      %985 = vmatprep.subr.mxu0 0.0
      %986 = vmatpush2.msra.mxu0 0.0
      %987 = vmatprep.subr.mxu0 0.0
      %988 = vmatpush2.msra.mxu0 0.0
      %989 = vmatprep.subr.mxu0 0.0
      %990 = vmatpush2.msra.mxu0 0.0
      %991 = vmatprep.subr.mxu0 0.0
      %992 = vmatpush2.msra.mxu0 0.0
      %993 = vmatprep.subr.mxu0 0.0
      %994 = vmatpush2.msra.mxu0 0.0
      %995 = vmatprep.subr.mxu0 0.0
      %996 = vmatpush2.msra.mxu0 0.0
      %997 = vmatprep.subr.mxu0 0.0
      %998 = vmatpush2.msra.mxu0 0.0
      %999 = vmatprep.subr.mxu0 0.0
      %1000 = vmatpush2.msra.mxu0 0.0
      %1001 = vmatprep.subr.mxu0 0.0
      %1002 = vmatpush2.msra.mxu0 0.0
      %1003 = vmatprep.subr.mxu0 0.0
      %1004 = vmatpush2.msra.mxu0 0.0
      %1005 = vmatprep.mubr.f32.mxu0 0.0
      %1006 = vmatmul.mubr.f32.gmra.mxu0 %v933
      %v1007 = vpop.f32.mrf.mxu0
      %v1008 = vadd.f32 %v928, %v1007
      %v1009 = vpop.f32.mrf.mxu0
      %v1010 = vadd.f32 %v930, %v1009
      %1011 = vdwg.mxu0
      %v1014 = vcombine.low %v1008, %v1010
      %1016 = vst [vmem:[%s406] sm:$0xff] %v1014
      %p1017 = scmp.lt.s32.totalorder %s22, 1
      %s1018 = scalar_select %p1017, %s22, 1
      %s1019 = smul.addr %s1018, 2
      %s1020 = smul.addr %s1019, 4
      %s1021 = scalar_lea.vmem %s11, %s1020
      // Predicated region
      $region65: #{cross_attention_forward.1} parent=63 // pred_check
        %p1022 = pneg %p281
      $region66: #{cross_attention_forward.1} parent=63 // pred_check_branch
        %1024 = sbr.rel (%p1022) target = $region68
      $region67: #{cross_attention_forward.1} parent=63 // pred_region
        _
      $region68: #{cross_attention_forward.1} parent=63 // pred_fallthru
        _
    $region64: #{cross_attention_forward.1} parent=5 // pred_fallthru
      _
    %p1025 = scmp.le.s32.totalorder 2, %s17
    // Predicated region
    $region69: #{cross_attention_forward.1} parent=5 // pred_check
      %p1026 = pneg %p1025
    $region70: #{cross_attention_forward.1} parent=5 // pred_check_branch
      %1028 = sbr.rel (%p1026) target = $region72
    $region71: #{cross_attention_forward.1} parent=5 // pred_region
      %s1029 = ssub.s32 %s17, 2
      // Predicated region
      $region73: #{cross_attention_forward.1} parent=71 // pred_check
        %p1030 = pneg %p287
      $region74: #{cross_attention_forward.1} parent=71 // pred_check_branch
        %1032 = sbr.rel (%p1030) target = $region76
      $region75: #{cross_attention_forward.1} parent=71 // pred_region
        %p1033 = scmp.lt.s32.totalorder %s23, 1
        %s1034 = scalar_select %p1033, %s23, 1
        %s1035 = smul.addr %s1034, 2
        %s1036 = smul.addr %s1035, 4
        %s1037 = scalar_lea.vmem %s11, %s1036
      $region76: #{cross_attention_forward.1} parent=71 // pred_fallthru
        _
    $region72: #{cross_attention_forward.1} parent=5 // pred_fallthru
      _
  $region6: #{cross_attention_forward.1} parent=0 // loop_footer
    %s21 = sadd.s32 1, %s17
  $region7: #{cross_attention_forward.1} parent=0 // loop_footer_branch
    %16 = sbr.rel target = $region3
  $region8: #{cross_attention_forward.1} parent=0 // loop_exit
    _

</llo_original>
